<compile_context>
chip_gen: v7x
topology: tpu7x:2x2x1
jax: 0.10.0
libtpu: 0.0.40
codegen_flags: <defaults>
</compile_context>

<pallas_src>
import functools

import jax
import jax.numpy as jnp
from jax.experimental import pallas as pl
from jax.experimental.pallas import tpu as pltpu


def _tv_kernel(x_ref, h_ref, w_ref, *, H, W):
    """One grid step: partial TV sums for a (TBC, H*W) slab of images."""
    HW = H * W
    x = x_ref[...].astype(jnp.float32)                 # (TBC, H*W), lane-dense

    # Vertical neighbours: flat[j + W] - flat[j], valid for j < (H-1)*W.
    dh = x[:, W:] - x[:, : (H - 1) * W]                # (TBC, (H-1)*W)
    h_ref[...] = jnp.sum(dh * dh).reshape(1, 1, 1)

    # Horizontal neighbours: flat[j + 1] - flat[j], valid iff j % W != W-1
    # (pairs that straddle an image-row boundary are masked out).
    dw = x[:, 1:] - x[:, : HW - 1]                     # (TBC, H*W - 1)
    col = jax.lax.broadcasted_iota(jnp.int32, dw.shape, dimension=1)
    dw2 = jnp.where(col % W != W - 1, dw * dw, 0.0)
    w_ref[...] = jnp.sum(dw2).reshape(1, 1, 1)


def tv_loss(x, tvloss_weight=1.0, *, block_images=None,
            target_block_bytes=1 << 20):
    """Pallas implementation of TVLoss.forward for NCHW input x."""
    B, C, H, W = x.shape
    BC = B * C
    HW = H * W

    x_flat = x.reshape(BC, HW)                         # lane-dense layout

    # Pick how many (b, c) images are fused per grid step (~1 MiB blocks).
    if block_images is None:
        block_images = max(1, target_block_bytes // (HW * x.dtype.itemsize))
    tbc = int(block_images)
    if tbc >= BC:
        tbc = BC                                       # single block == full extent
    else:
        tbc = max(8, (tbc // 8) * 8)                   # keep sublane dim 8-aligned

    g = pl.cdiv(BC, tbc)
    bc_padded = g * tbc
    if bc_padded != BC:
        # Zero-padded images contribute 0 to both sums (diffs never cross images).
        x_flat = jnp.pad(x_flat, ((0, bc_padded - BC), (0, 0)))

    kernel = functools.partial(_tv_kernel, H=H, W=W)
    h_parts, w_parts = pl.pallas_call(
        kernel,
        out_shape=(
            jax.ShapeDtypeStruct((g, 1, 1), jnp.float32),
            jax.ShapeDtypeStruct((g, 1, 1), jnp.float32),
        ),
        grid_spec=pltpu.PrefetchScalarGridSpec(
            num_scalar_prefetch=0,
            grid=(g,),
            in_specs=[pl.BlockSpec((tbc, HW), lambda i: (i, 0))],
            out_specs=(
                pl.BlockSpec((1, 1, 1), lambda i: (i, 0, 0)),
                pl.BlockSpec((1, 1, 1), lambda i: (i, 0, 0)),
            ),
        ),
        compiler_params=pltpu.CompilerParams(
            dimension_semantics=("parallel",),
            vmem_limit_bytes=32 * 1024 * 1024,
        ),
    )(x_flat)

    h_tv = jnp.sum(h_parts)
    w_tv = jnp.sum(w_parts)

    count_h = C * (H - 1) * W
    count_w = C * H * (W - 1)
    return tvloss_weight * 2.0 * (h_tv / count_h + w_tv / count_w) / B


def tv_loss_ref(x, tvloss_weight=1.0):
    """Pure-JAX reference mirroring the PyTorch forward."""
    B, C, H, W = x.shape
    count_h = C * (H - 1) * W
    count_w = C * H * (W - 1)
    h_tv = jnp.sum(jnp.square(x[:, :, 1:, :] - x[:, :, : H - 1, :]))
    w_tv = jnp.sum(jnp.square(x[:, :, :, 1:] - x[:, :, :, : W - 1]))
    return tvloss_weight * 2.0 * (h_tv / count_h + w_tv / count_w) / B


if __name__ == "__main__":
    key = jax.random.PRNGKey(0)
    k1, k2 = jax.random.split(key)

    # Small NCHW input matching the original module's expected layout.
    x = jax.random.normal(k1, (2, 4, 16, 16), dtype=jnp.float32)
    out = jax.block_until_ready(tv_loss(x, tvloss_weight=1.0))
    ref = tv_loss_ref(x, tvloss_weight=1.0)
    assert jnp.allclose(out, ref, rtol=1e-5, atol=1e-5), (out, ref)

    # Exercise the multi-block grid + zero-padding path (BC=20, TBC=8 -> grid=3).
    x2 = jax.random.normal(k2, (4, 5, 20, 24), dtype=jnp.float32)
    out2 = jax.block_until_ready(tv_loss(x2, tvloss_weight=0.5, block_images=8))
    ref2 = tv_loss_ref(x2, tvloss_weight=0.5)
    assert jnp.allclose(out2, ref2, rtol=1e-5, atol=1e-5), (out2, ref2)

    print("KERNEL_OK")
</pallas_src>

<mosaic_0001>
module attributes {stable_mosaic.version = 11 : i64} {
  func.func @_tv_kernel(%arg0: i32, %arg1: memref<8x256xf32, #tpu.memory_space<vmem>>, %arg2: memref<1x1x1xf32, #tpu.memory_space<vmem>>, %arg3: memref<1x1x1xf32, #tpu.memory_space<vmem>>) attributes {dimension_semantics = [#tpu.dimension_semantics<parallel>], iteration_bounds = array<i64: 1>, scalar_prefetch = 0 : i64, scratch_operands = 0 : i64, tpu.core_type = #tpu.core_type<tc>, window_params = [{transform_indices = @transform_0, window_bounds = array<i64: 8, 256>}, {transform_indices = @transform_1, window_bounds = array<i64: 1, 1, 1>}, {transform_indices = @transform_2, window_bounds = array<i64: 1, 1, 1>}]} {
    %c0 = arith.constant 0 : index
    %c0_0 = arith.constant 0 : index
    %0 = vector.load %arg1[%c0, %c0_0] : memref<8x256xf32, #tpu.memory_space<vmem>>, vector<8x256xf32>
    %1 = vector.extract_strided_slice %0 {offsets = [0, 16], sizes = [8, 240], strides = [1, 1]} : vector<8x256xf32> to vector<8x240xf32>
    %2 = vector.extract_strided_slice %0 {offsets = [0, 0], sizes = [8, 240], strides = [1, 1]} : vector<8x256xf32> to vector<8x240xf32>
    %3 = arith.subf %1, %2 : vector<8x240xf32>
    %4 = arith.mulf %3, %3 : vector<8x240xf32>
    %5 = vector.shape_cast %4 : vector<8x240xf32> to vector<1x8x240xf32>
    %cst = arith.constant dense<0.000000e+00> : vector<1xf32>
    %6 = vector.multi_reduction <add>, %5, %cst [1, 2] : vector<1x8x240xf32> to vector<1xf32>
    %7 = vector.shape_cast %6 : vector<1xf32> to vector<1x1x1xf32>
    %8 = vector.extract %7[0, 0, 0] : f32 from vector<1x1x1xf32>
    %9 = vector.broadcast %8 : f32 to vector<1x1x1xf32>
    %c0_1 = arith.constant 0 : index
    %c0_2 = arith.constant 0 : index
    %c0_3 = arith.constant 0 : index
    %10 = vector.load %arg2[%c0_1, %c0_2, %c0_3] : memref<1x1x1xf32, #tpu.memory_space<vmem>>, vector<1x1x1xf32>
    tpu.vector_store %arg2[%c0_1, %c0_2, %c0_3], %9 {strides = array<i32>} : memref<1x1x1xf32, #tpu.memory_space<vmem>>, vector<1x1x1xf32>,
    %11 = vector.extract_strided_slice %0 {offsets = [0, 1], sizes = [8, 255], strides = [1, 1]} : vector<8x256xf32> to vector<8x255xf32>
    %12 = vector.extract_strided_slice %0 {offsets = [0, 0], sizes = [8, 255], strides = [1, 1]} : vector<8x256xf32> to vector<8x255xf32>
    %13 = arith.subf %11, %12 : vector<8x255xf32>
    %14 = tpu.iota {dimensions = array<i32: 1>} : vector<8x255xi32>
    %c16_i32 = arith.constant 16 : i32
    %c0_i32 = arith.constant 0 : i32
    %15 = arith.cmpi eq, %c16_i32, %c0_i32 : i32
    %c1_i32 = arith.constant 1 : i32
    %16 = arith.select %15, %c1_i32, %c16_i32 : i32
    %17 = vector.broadcast %16 : i32 to vector<8x255xi32>
    %18 = arith.remsi %14, %17 : vector<8x255xi32>
    %c0_i32_4 = arith.constant 0 : i32
    %19 = vector.broadcast %c0_i32_4 : i32 to vector<8x255xi32>
    %20 = arith.cmpi ne, %18, %19 : vector<8x255xi32>
    %c0_i32_5 = arith.constant 0 : i32
    %21 = vector.broadcast %c0_i32_5 : i32 to vector<8x255xi32>
    %22 = arith.cmpi slt, %18, %21 : vector<8x255xi32>
    %c0_i32_6 = arith.constant 0 : i32
    %23 = arith.cmpi slt, %16, %c0_i32_6 : i32
    %24 = vector.broadcast %23 : i1 to vector<8x255xi1>
    %25 = vector.broadcast %24 : vector<8x255xi1> to vector<8x255xi1>
    %26 = arith.xori %22, %25 : vector<8x255xi1>
    %27 = arith.andi %26, %20 : vector<8x255xi1>
    %28 = vector.broadcast %16 : i32 to vector<8x255xi32>
    %29 = arith.addi %18, %28 : vector<8x255xi32>
    %30 = arith.select %27, %29, %18 : vector<8x255xi1>, vector<8x255xi32>
    %c15_i32 = arith.constant 15 : i32
    %31 = vector.broadcast %c15_i32 : i32 to vector<8x255xi32>
    %32 = arith.cmpi ne, %30, %31 : vector<8x255xi32>
    %33 = arith.mulf %13, %13 : vector<8x255xf32>
    %cst_7 = arith.constant 0.000000e+00 : f32
    %34 = vector.broadcast %cst_7 : f32 to vector<8x255xf32>
    %35 = arith.select %32, %33, %34 : vector<8x255xi1>, vector<8x255xf32>
    %36 = vector.shape_cast %35 : vector<8x255xf32> to vector<1x8x255xf32>
    %cst_8 = arith.constant dense<0.000000e+00> : vector<1xf32>
    %37 = vector.multi_reduction <add>, %36, %cst_8 [1, 2] : vector<1x8x255xf32> to vector<1xf32>
    %38 = vector.shape_cast %37 : vector<1xf32> to vector<1x1x1xf32>
    %39 = vector.extract %38[0, 0, 0] : f32 from vector<1x1x1xf32>
    %40 = vector.broadcast %39 : f32 to vector<1x1x1xf32>
    %c0_9 = arith.constant 0 : index
    %c0_10 = arith.constant 0 : index
    %c0_11 = arith.constant 0 : index
    %41 = vector.load %arg3[%c0_9, %c0_10, %c0_11] : memref<1x1x1xf32, #tpu.memory_space<vmem>>, vector<1x1x1xf32>
    tpu.vector_store %arg3[%c0_9, %c0_10, %c0_11], %40 {strides = array<i32>} : memref<1x1x1xf32, #tpu.memory_space<vmem>>, vector<1x1x1xf32>,
    return
  }
  func.func @transform_0(%arg0: i32) -> (i32, i32) {
    %c0_i32 = arith.constant 0 : i32
    %c0_i32_0 = arith.constant 0 : i32
    return %arg0, %c0_i32 : i32, i32
  }
  func.func @transform_1(%arg0: i32) -> (i32, i32, i32) {
    %c0_i32 = arith.constant 0 : i32
    %c0_i32_0 = arith.constant 0 : i32
    %c0_i32_1 = arith.constant 0 : i32
    return %arg0, %c0_i32, %c0_i32_0 : i32, i32, i32
  }
  func.func @transform_2(%arg0: i32) -> (i32, i32, i32) {
    %c0_i32 = arith.constant 0 : i32
    %c0_i32_0 = arith.constant 0 : i32
    %c0_i32_1 = arith.constant 0 : i32
    return %arg0, %c0_i32, %c0_i32_0 : i32, i32, i32
  }
}

</mosaic_0001>

<llo_original>
// kernel: tpu_custom_call.1
$region0: #{tpu_custom_call.1}
  #allocation0 [shape = 'u32[]', space=smem, size = 0x4, offset = 0x4, fixed_abs, tag = 'smem constant byte address 0x4 - core index']
  #allocation1 [shape = 'u32[144,128]{1,0:T(1,128)}', space=vmem, size = 0x12000, scoped, tag = 'internal scratch']
  %s0 = inlined_call_operand.hbm [shape: f32[8,256], index: 0, kind: input, shape index: {}]
  %s1 = inlined_call_operand.hbm [shape: f32[1,1,1], index: 1, kind: output, shape index: {0}]
  %s2 = inlined_call_operand.hbm [shape: f32[1,1,1], index: 2, kind: output, shape index: {1}]
  %3 = xla_tuple %s1, %s2
  %s4 = sld [smem:[#allocation0]]
  $region26: #{tpu_custom_call.1} parent=0
    _
  %s6 = ssub.s32 1, %s4
  %s7 = scalar_select 0, %s6, %s4
  $region1: #{tpu_custom_call.1} parent=0
    #allocation2 [shape = 'u8[8192]{0}', space=vmem, size = 0x2000, scoped, tag = 'input window, operand 0, single buffered']
    #allocation3 [shape = 's32[1]{0}', space=sflag, size = 0x4, scoped, tag = 'scoped memory for tpu_custom_call.1']
    #allocation4 [shape = 's32[1]{0}', space=sflag, size = 0x4, scoped, tag = 'scoped memory for tpu_custom_call.1']
    #allocation5 [shape = 'u8[512]{0}', space=vmem, size = 0x400, scoped, tag = 'output window, operand 0, single buffered']
    #allocation6 [shape = 'u8[512]{0}', space=vmem, size = 0x400, scoped, tag = 'output window, operand 1, single buffered']
    #allocation7 [shape = 's32[1]{0}', space=sflag, size = 0x4, scoped, tag = 'scoped memory for tpu_custom_call.1']
    %8 = vsyncpa [#allocation3], 0
    %9 = vsyncpa [#allocation4], 0
    %10 = vsyncpa [#allocation7], 0
    // Predicated region
    $region2: #{tpu_custom_call.1} parent=1 // pred_check
      _
    $region3: #{tpu_custom_call.1} parent=1 // pred_check_branch
      %12 = sbr.rel (0) target = $region5
    $region4: #{tpu_custom_call.1} parent=1 // pred_region
      %s14 = ssub.s32 256, 256
      %15 = vsyncadd [#allocation3], %s14
      %s17 = sshll.u32 [#allocation2], 4
      %s18 = int_to_ptr.vmem [resolvable:$true] %s17
      %20 = dma.hbm_to_vmem [thread:$0]  %s0, 256, %s18, [#allocation3]
    $region5: #{tpu_custom_call.1} parent=1 // pred_fallthru
      _
    // Predicated region
    $region6: #{tpu_custom_call.1} parent=1 // pred_check
      _
    $region7: #{tpu_custom_call.1} parent=1 // pred_check_branch
      %22 = sbr.rel (0) target = $region9
    $region8: #{tpu_custom_call.1} parent=1 // pred_region
      %23 = dma.done [#allocation3], 256
    $region9: #{tpu_custom_call.1} parent=1 // pred_fallthru
      _
    %v24 = vld [vmem:[#allocation2] sm:$0xff]
    %v25 = vld [vmem:[#allocation2 + $0x8] sm:$0xff]
    %28 = vrot.lane.b32.xlu0 %v24, 16
    %v29 = vpop.permute.xlu0 %28
    %30 = vrot.lane.b32.xlu0 %v25, 16
    %v31 = vpop.permute.xlu0 %30
    %vm32 = vcmask 130048
    %v33 = vsel %vm32, %v29, %v31
    %v36 = vsub.f32 %v24, %v29
    %v37 = vsub.f32 %v25, %v33
    %v38 = vmul.f32 %v36, %v36
    %v39 = vmul.f32 %v37, %v37
    %42 = vrot.lane.b32.xlu0 %v38, 112
    %v43 = vpop.permute.xlu0 %42
    %44 = vrot.lane.b32.xlu0 %v39, 112
    %v45 = vpop.permute.xlu0 %44
    %vm46 = vcmask 916480
    %v47 = vsel %vm46, %v43, %v45
    %v50 = vsel %vm46, %v45, 0.0
    %v51 = vadd.f32 %v47, %v50
    %52 = vadd.xlane.f32.xlu0 %v51
    %v53 = vpop.xlane.xlu0 %52
    %v54 = vrot.slane %v53, 4
    %v55 = vadd.f32 %v53, %v54
    %v56 = vrot.slane %v55, 2
    %v57 = vadd.f32 %v55, %v56
    %v58 = vrot.slane %v57, 1
    %v59 = vadd.f32 %v57, %v58
    %s60 = vtos %v59
    %v61 = vstv %s60
    %vm62 = vcmask 0
    %63 = vst.msk [vmem:[#allocation5] sm:$0x1] %vm62, %v61
    %64 = vrot.lane.b32.xlu0 %v24, 1
    %v65 = vpop.permute.xlu0 %64
    %66 = vrot.lane.b32.xlu0 %v25, 1
    %v67 = vpop.permute.xlu0 %66
    %vm68 = vcmask 7168
    %v69 = vsel %vm68, %v65, %v67
    %v72 = vsub.f32 %v24, %v65
    %v73 = vsub.f32 %v25, %v69
    %v74 = vlaneseq
    %v75 = vand.u32 %v74, 127
    %v76 = vadd.s32 %v75, 128
    %vm77 = vcmp.lt.s32.totalorder %v75, 0
    %v78 = vsub.s32 0, %v75
    %v79 = vsel %vm77, %v78, %v75
    %v80 = vshrl.u32 %v79, 4
    %v81 = vand.u32 %v79, 15
    %v82 = vsub.s32 0, %v81
    %v83 = vsel %vm77, %v82, %v81
    %vm84 = vcmp.lt.s32.totalorder %v76, 0
    %v85 = vsub.s32 0, %v76
    %v86 = vsel %vm84, %v85, %v76
    %v87 = vshrl.u32 %v86, 4
    %v88 = vand.u32 %v86, 15
    %v89 = vsub.s32 0, %v88
    %v90 = vsel %vm84, %v89, %v88
    %vm91 = vcmp.ne.s32.totalorder %v83, 0
    %vm92 = vcmp.ne.s32.totalorder %v90, 0
    %vm93 = vcmp.lt.s32.totalorder %v83, 0
    %vm94 = vcmp.lt.s32.totalorder %v90, 0
    %vm95 = vmand %vm93, %vm91
    %vm96 = vmand %vm94, %vm92
    %v97 = vadd.s32 %v83, 16
    %v98 = vadd.s32 %v90, 16
    %v99 = vsel %vm95, %v97, %v83
    %v100 = vsel %vm96, %v98, %v90
    %vm101 = vcmp.ne.s32.totalorder %v99, 15
    %vm102 = vcmp.ne.s32.totalorder %v100, 15
    %v103 = vmul.f32 %v72, %v72
    %v104 = vmul.f32 %v73, %v73
    %107 = vrot.lane.b32.xlu0 %v103, 127
    %v108 = vpop.permute.xlu0 %107
    %109 = vrot.lane.b32.xlu0 %v104, 127
    %v110 = vpop.permute.xlu0 %109
    %vm111 = vcmask 1039360
    %v112 = vsel %vm111, %v108, %v110
    %v115 = vsel %vm101, %v112, 0.0
    %v116 = vsel %vm102, %v110, 0.0
    %v117 = vsel %vm111, %v116, 0.0
    %v118 = vadd.f32 %v115, %v117
    %119 = vadd.xlane.f32.xlu0 %v118
    %v120 = vpop.xlane.xlu0 %119
    %v121 = vrot.slane %v120, 4
    %v122 = vadd.f32 %v120, %v121
    %v123 = vrot.slane %v122, 2
    %v124 = vadd.f32 %v122, %v123
    %v125 = vrot.slane %v124, 1
    %v126 = vadd.f32 %v124, %v125
    %s127 = vtos %v126
    %v128 = vstv %s127
    %129 = vst.msk [vmem:[#allocation6] sm:$0x1] %vm62, %v128
    // Predicated region
    $region10: #{tpu_custom_call.1} parent=1 // pred_check
      _
    $region11: #{tpu_custom_call.1} parent=1 // pred_check_branch
      %131 = sbr.rel (0) target = $region13
    $region12: #{tpu_custom_call.1} parent=1 // pred_region
      %s133 = ssub.s32 16, 16
      %134 = vsyncadd [#allocation4], %s133
      %s136 = sshll.u32 [#allocation5], 4
      %s137 = int_to_ptr.vmem [resolvable:$true] %s136
      %139 = dma.vmem_to_hbm [thread:$0]  %s137, 16, %s1, [#allocation4]
    $region13: #{tpu_custom_call.1} parent=1 // pred_fallthru
      _
    // Predicated region
    $region14: #{tpu_custom_call.1} parent=1 // pred_check
      _
    $region15: #{tpu_custom_call.1} parent=1 // pred_check_branch
      %141 = sbr.rel (0) target = $region17
    $region16: #{tpu_custom_call.1} parent=1 // pred_region
      %s143 = ssub.s32 16, 16
      %144 = vsyncadd [#allocation7], %s143
      %s146 = sshll.u32 [#allocation6], 4
      %s147 = int_to_ptr.vmem [resolvable:$true] %s146
      %149 = dma.vmem_to_hbm [thread:$0]  %s147, 16, %s2, [#allocation7]
    $region17: #{tpu_custom_call.1} parent=1 // pred_fallthru
      _
    // Predicated region
    $region18: #{tpu_custom_call.1} parent=1 // pred_check
      _
    $region19: #{tpu_custom_call.1} parent=1 // pred_check_branch
      %151 = sbr.rel (0) target = $region21
    $region20: #{tpu_custom_call.1} parent=1 // pred_region
      %152 = dma.done [#allocation4], 16
    $region21: #{tpu_custom_call.1} parent=1 // pred_fallthru
      _
    // Predicated region
    $region22: #{tpu_custom_call.1} parent=1 // pred_check
      _
    $region23: #{tpu_custom_call.1} parent=1 // pred_check_branch
      %154 = sbr.rel (0) target = $region25
    $region24: #{tpu_custom_call.1} parent=1 // pred_region
      %155 = dma.done [#allocation7], 16
    $region25: #{tpu_custom_call.1} parent=1 // pred_fallthru
      _
    %156 = vsyncpa [#allocation3], 1
    %157 = vsyncpa [#allocation4], 1
    %158 = vsyncpa [#allocation7], 1

</llo_original>
